<compile_context>
chip_gen: v5e
topology: v5e:2x2
jax: 0.10.0
libtpu: 0.0.40
codegen_flags: <defaults>
</compile_context>

<pallas_src>
from functools import partial

import jax
import jax.numpy as jnp
from jax.experimental import pallas as pl
from jax.experimental.pallas import tpu as pltpu


def _mish(z):
    # z * tanh(softplus(z)), numerically stable softplus.
    sp = jnp.maximum(z, 0.0) + jnp.log(1.0 + jnp.exp(-jnp.abs(z)))
    return z * jnp.tanh(sp)


def _conv1d_block_kernel(x_ref, w_ref, b_ref, g_ref, beta_ref, o_ref,
                         *, n_taps, n_groups, eps=1e-5):
    # x_ref:    (B_TILE, C_in, L)      unpadded input tile (several batch elems)
    # w_ref:    (C_out, K*C_in)        fused conv weight, tap-major along C_in
    # b_ref:    (C_out, 1)             conv bias
    # g_ref:    (C_out, 1)             GroupNorm gamma
    # beta_ref: (C_out, 1)             GroupNorm beta
    # o_ref:    (B_TILE, C_out, L)     output tile
    b_tile, c_in, l = x_ref.shape
    c_out = o_ref.shape[1]
    pad = n_taps // 2
    cg = c_out // n_groups
    denom = 1.0 / float(cg * l)

    # Small, reused operands: load once, keep in vregs across the batch unroll.
    w = w_ref[...]          # (C_out, K*C_in)
    bias = b_ref[...]       # (C_out, 1)
    gamma = g_ref[...]      # (C_out, 1)
    beta = beta_ref[...]    # (C_out, 1)

    # Static unroll over the (small) batch tile; each iteration is one fused
    # MXU matmul + per-sample GroupNorm + Mish.
    for b in range(b_tile):
        xb = x_ref[b]       # (C_in, L)

        # Assemble the (K*C_in, L) slab in-VMEM: tap kk is x shifted by
        # (kk - pad) with zero fill at the edges (== PyTorch padding=k//2).
        # All loads are contiguous along the lane axis (no strided slices).
        taps = []
        for kk in range(n_taps):
            off = kk - pad
            if off == 0:
                taps.append(xb)
            elif off < 0:
                z = jnp.zeros((c_in, -off), xb.dtype)
                taps.append(jnp.concatenate([z, xb[:, : l + off]], axis=1))
            else:
                z = jnp.zeros((c_in, off), xb.dtype)
                taps.append(jnp.concatenate([xb[:, off:], z], axis=1))
        slab = jnp.concatenate(taps, axis=0)        # (K*C_in, L), tap-major

        # One fused MXU matmul: contraction dim = K*C_in.
        y = jnp.dot(w, slab, preferred_element_type=jnp.float32) + bias  # (C_out, L)

        # GroupNorm: per sample, per group over (C_out//G, L).
        y3 = y.reshape(n_groups, cg, l)
        s = jnp.sum(jnp.sum(y3, axis=2, keepdims=True), axis=1, keepdims=True)
        mean = s * denom
        d = y3 - mean
        v = jnp.sum(jnp.sum(d * d, axis=2, keepdims=True), axis=1, keepdims=True)
        var = v * denom
        yn = (d * jax.lax.rsqrt(var + eps)).reshape(c_out, l)
        z = yn * gamma + beta

        o_ref[b] = _mish(z).astype(o_ref.dtype)


def conv1d_block(x, weight, bias, gamma, beta, *, n_groups=8, b_tile=None):
    """Conv1d(padding=k//2, stride=1) -> GroupNorm(n_groups) -> Mish.

    x:      (N, C_in, L)  f32
    weight: (C_out, C_in, K)
    bias, gamma, beta: (C_out,)
    returns (N, C_out, L)
    """
    n, c_in, l = x.shape
    c_out, c_in_w, k = weight.shape
    assert c_in_w == c_in
    assert c_out % n_groups == 0
    # TODO(synk): even kernel sizes change the output length under PyTorch's
    # padding=k//2; only odd k (same-length output) is supported here.
    assert k % 2 == 1

    if b_tile is None:
        b_tile = min(n, 8)
        while n % b_tile:
            b_tile -= 1
    b_tile = max(b_tile, 1)

    # Fuse the K taps into the contraction dim, tap-major along C_in:
    # w_fused[o, kk*C_in + i] = weight[o, i, kk]
    w_fused = jnp.transpose(weight, (0, 2, 1)).reshape(c_out, k * c_in)
    b2 = bias.reshape(c_out, 1)
    g2 = gamma.reshape(c_out, 1)
    be2 = beta.reshape(c_out, 1)

    kernel = partial(_conv1d_block_kernel, n_taps=k, n_groups=n_groups)

    return pl.pallas_call(
        kernel,
        out_shape=jax.ShapeDtypeStruct((n, c_out, l), x.dtype),
        grid_spec=pltpu.PrefetchScalarGridSpec(
            num_scalar_prefetch=0,
            grid=(n // b_tile,),   # several batch elements per grid step
            in_specs=[
                pl.BlockSpec((b_tile, c_in, l), lambda i: (i, 0, 0)),  # input tile
                pl.BlockSpec((c_out, k * c_in), lambda i: (0, 0)),     # fused weight
                pl.BlockSpec((c_out, 1), lambda i: (0, 0)),            # bias
                pl.BlockSpec((c_out, 1), lambda i: (0, 0)),            # gamma
                pl.BlockSpec((c_out, 1), lambda i: (0, 0)),            # beta
            ],
            out_specs=pl.BlockSpec((b_tile, c_out, l), lambda i: (i, 0, 0)),
        ),
        compiler_params=pltpu.CompilerParams(
            dimension_semantics=("parallel",),
        ),
    )(x, w_fused, b2, g2, be2)


def _reference_conv1d_block(x, weight, bias, gamma, beta, n_groups, eps=1e-5):
    # Pure-JAX reference matching PyTorch Conv1d(pad=k//2) -> GroupNorm -> Mish.
    k = weight.shape[-1]
    pad = k // 2
    y = jax.lax.conv_general_dilated(
        x, weight, window_strides=(1,), padding=[(pad, pad)],
        dimension_numbers=("NCH", "OIH", "NCH"),
    ) + bias[None, :, None]
    n, c, l = y.shape
    yg = y.reshape(n, n_groups, c // n_groups, l)
    mean = yg.mean(axis=(2, 3), keepdims=True)
    var = ((yg - mean) ** 2).mean(axis=(2, 3), keepdims=True)
    yn = ((yg - mean) * jax.lax.rsqrt(var + eps)).reshape(n, c, l)
    z = yn * gamma[None, :, None] + beta[None, :, None]
    return _mish(z)


if __name__ == "__main__":
    batch, inp_ch, out_ch, length, ksize, groups = 2, 8, 16, 16, 3, 8

    key = jax.random.PRNGKey(0)
    kx, kw, kb, kg, kbt = jax.random.split(key, 5)
    x = jax.random.normal(kx, (batch, inp_ch, length), dtype=jnp.float32)

    # Deterministic synthetic params (shapes from nn.Conv1d / nn.GroupNorm).
    fan_in = inp_ch * ksize
    bound = 1.0 / (fan_in ** 0.5)
    weight = jax.random.uniform(kw, (out_ch, inp_ch, ksize), jnp.float32, -bound, bound)
    bias = jax.random.uniform(kb, (out_ch,), jnp.float32, -bound, bound)
    gamma = 1.0 + 0.1 * jax.random.normal(kg, (out_ch,), dtype=jnp.float32)
    beta = 0.1 * jax.random.normal(kbt, (out_ch,), dtype=jnp.float32)

    out = conv1d_block(x, weight, bias, gamma, beta, n_groups=groups)
    out = jax.block_until_ready(out)

    ref = _reference_conv1d_block(x, weight, bias, gamma, beta, groups)
    assert out.shape == (batch, out_ch, length), out.shape
    assert jnp.allclose(out, ref, atol=1e-5, rtol=1e-5), (
        float(jnp.max(jnp.abs(out - ref)))
    )
    print("KERNEL_OK")
</pallas_src>

<mosaic_0001>
module attributes {stable_mosaic.version = 11 : i64} {
  func.func @_conv1d_block_kernel(%arg0: i32, %arg1: memref<2x8x16xf32, #tpu.memory_space<vmem>>, %arg2: memref<16x24xf32, #tpu.memory_space<vmem>>, %arg3: memref<16x1xf32, #tpu.memory_space<vmem>>, %arg4: memref<16x1xf32, #tpu.memory_space<vmem>>, %arg5: memref<16x1xf32, #tpu.memory_space<vmem>>, %arg6: memref<2x16x16xf32, #tpu.memory_space<vmem>>) attributes {dimension_semantics = [#tpu.dimension_semantics<parallel>], iteration_bounds = array<i64: 1>, scalar_prefetch = 0 : i64, scratch_operands = 0 : i64, tpu.core_type = #tpu.core_type<tc>, window_params = [{transform_indices = @transform_0, window_bounds = array<i64: 2, 8, 16>}, {pipeline_mode = #tpu.pipeline_mode<synchronous>, transform_indices = @transform_1, window_bounds = array<i64: 16, 24>}, {pipeline_mode = #tpu.pipeline_mode<synchronous>, transform_indices = @transform_2, window_bounds = array<i64: 16, 1>}, {pipeline_mode = #tpu.pipeline_mode<synchronous>, transform_indices = @transform_3, window_bounds = array<i64: 16, 1>}, {pipeline_mode = #tpu.pipeline_mode<synchronous>, transform_indices = @transform_4, window_bounds = array<i64: 16, 1>}, {transform_indices = @transform_5, window_bounds = array<i64: 2, 16, 16>}]} {
    %c0 = arith.constant 0 : index
    %c0_0 = arith.constant 0 : index
    %0 = vector.load %arg2[%c0, %c0_0] : memref<16x24xf32, #tpu.memory_space<vmem>>, vector<16x24xf32>
    %c0_1 = arith.constant 0 : index
    %c0_2 = arith.constant 0 : index
    %1 = vector.load %arg3[%c0_1, %c0_2] : memref<16x1xf32, #tpu.memory_space<vmem>>, vector<16x1xf32>
    %c0_3 = arith.constant 0 : index
    %c0_4 = arith.constant 0 : index
    %2 = vector.load %arg4[%c0_3, %c0_4] : memref<16x1xf32, #tpu.memory_space<vmem>>, vector<16x1xf32>
    %c0_5 = arith.constant 0 : index
    %c0_6 = arith.constant 0 : index
    %3 = vector.load %arg5[%c0_5, %c0_6] : memref<16x1xf32, #tpu.memory_space<vmem>>, vector<16x1xf32>
    %c0_7 = arith.constant 0 : index
    %c0_8 = arith.constant 0 : index
    %c0_9 = arith.constant 0 : index
    %4 = vector.load %arg1[%c0_7, %c0_8, %c0_9] : memref<2x8x16xf32, #tpu.memory_space<vmem>>, vector<1x8x16xf32>
    %5 = vector.shape_cast %4 : vector<1x8x16xf32> to vector<8x16xf32>
    %cst = arith.constant 0.000000e+00 : f32
    %6 = vector.broadcast %cst : f32 to vector<8x1xf32>
    %7 = vector.extract_strided_slice %5 {offsets = [0, 0], sizes = [8, 15], strides = [1, 1]} : vector<8x16xf32> to vector<8x15xf32>
    %8 = tpu.concatenate %6, %7 in 1 : vector<8x1xf32>, vector<8x15xf32> -> vector<8x16xf32>
    %cst_10 = arith.constant 0.000000e+00 : f32
    %9 = vector.broadcast %cst_10 : f32 to vector<8x1xf32>
    %10 = vector.extract_strided_slice %5 {offsets = [0, 1], sizes = [8, 15], strides = [1, 1]} : vector<8x16xf32> to vector<8x15xf32>
    %11 = tpu.concatenate %10, %9 in 1 : vector<8x15xf32>, vector<8x1xf32> -> vector<8x16xf32>
    %12 = tpu.concatenate %8, %5, %11 in 0 : vector<8x16xf32>, vector<8x16xf32>, vector<8x16xf32> -> vector<24x16xf32>
    %cst_11 = arith.constant dense<0.000000e+00> : vector<16x16xf32>
    %13 = tpu.matmul %0, %12, %cst_11 {dimension_numbers = #tpu.dot_dimension_numbers<[1], [0], [0], [1], [0, 0, 1, 1], [], []>} : vector<16x24xf32>, vector<24x16xf32>, vector<16x16xf32> -> vector<16x16xf32>
    %14 = vector.broadcast %1 : vector<16x1xf32> to vector<16x16xf32>
    %15 = arith.addf %13, %14 : vector<16x16xf32>
    %16 = vector.shape_cast %15 : vector<16x16xf32> to vector<8x2x16xf32>
    %cst_12 = arith.constant dense<0.000000e+00> : vector<8x2xf32>
    %17 = vector.multi_reduction <add>, %16, %cst_12 [2] : vector<8x2x16xf32> to vector<8x2xf32>
    %18 = vector.shape_cast %17 : vector<8x2xf32> to vector<8x2x1xf32>
    %cst_13 = arith.constant dense<0.000000e+00> : vector<8x1xf32>
    %19 = vector.multi_reduction <add>, %18, %cst_13 [1] : vector<8x2x1xf32> to vector<8x1xf32>
    %20 = vector.shape_cast %19 : vector<8x1xf32> to vector<8x1x1xf32>
    %cst_14 = arith.constant 3.125000e-02 : f32
    %21 = vector.broadcast %cst_14 : f32 to vector<8x1x1xf32>
    %22 = arith.mulf %20, %21 : vector<8x1x1xf32>
    %23 = vector.broadcast %22 : vector<8x1x1xf32> to vector<8x2x16xf32>
    %24 = arith.subf %16, %23 : vector<8x2x16xf32>
    %25 = arith.mulf %24, %24 : vector<8x2x16xf32>
    %cst_15 = arith.constant dense<0.000000e+00> : vector<8x2xf32>
    %26 = vector.multi_reduction <add>, %25, %cst_15 [2] : vector<8x2x16xf32> to vector<8x2xf32>
    %27 = vector.shape_cast %26 : vector<8x2xf32> to vector<8x2x1xf32>
    %cst_16 = arith.constant dense<0.000000e+00> : vector<8x1xf32>
    %28 = vector.multi_reduction <add>, %27, %cst_16 [1] : vector<8x2x1xf32> to vector<8x1xf32>
    %29 = vector.shape_cast %28 : vector<8x1xf32> to vector<8x1x1xf32>
    %cst_17 = arith.constant 3.125000e-02 : f32
    %30 = vector.broadcast %cst_17 : f32 to vector<8x1x1xf32>
    %31 = arith.mulf %29, %30 : vector<8x1x1xf32>
    %cst_18 = arith.constant 9.99999974E-6 : f32
    %32 = vector.broadcast %cst_18 : f32 to vector<8x1x1xf32>
    %33 = arith.addf %31, %32 : vector<8x1x1xf32>
    %34 = math.rsqrt %33 : vector<8x1x1xf32>
    %35 = vector.broadcast %34 : vector<8x1x1xf32> to vector<8x2x16xf32>
    %36 = arith.mulf %24, %35 : vector<8x2x16xf32>
    %37 = vector.shape_cast %36 : vector<8x2x16xf32> to vector<16x16xf32>
    %38 = vector.broadcast %2 : vector<16x1xf32> to vector<16x16xf32>
    %39 = arith.mulf %37, %38 : vector<16x16xf32>
    %40 = vector.broadcast %3 : vector<16x1xf32> to vector<16x16xf32>
    %41 = arith.addf %39, %40 : vector<16x16xf32>
    %cst_19 = arith.constant 0.000000e+00 : f32
    %42 = vector.broadcast %cst_19 : f32 to vector<16x16xf32>
    %43 = arith.maximumf %41, %42 : vector<16x16xf32>
    %44 = math.absf %41 : vector<16x16xf32>
    %cst_20 = arith.constant 0.000000e+00 : f32
    %45 = vector.broadcast %cst_20 : f32 to vector<16x16xf32>
    %46 = arith.subf %45, %44 : vector<16x16xf32>
    %47 = math.exp %46 : vector<16x16xf32>
    %cst_21 = arith.constant 1.000000e+00 : f32
    %48 = vector.broadcast %cst_21 : f32 to vector<16x16xf32>
    %49 = arith.addf %48, %47 : vector<16x16xf32>
    %50 = math.log %49 : vector<16x16xf32>
    %51 = arith.addf %43, %50 : vector<16x16xf32>
    %52 = math.tanh %51 : vector<16x16xf32>
    %53 = arith.mulf %41, %52 : vector<16x16xf32>
    %c0_22 = arith.constant 0 : index
    %c0_23 = arith.constant 0 : index
    %c0_24 = arith.constant 0 : index
    %54 = vector.load %arg6[%c0_22, %c0_23, %c0_24] : memref<2x16x16xf32, #tpu.memory_space<vmem>>, vector<1x16x16xf32>
    %55 = vector.shape_cast %54 : vector<1x16x16xf32> to vector<16x16xf32>
    %56 = vector.shape_cast %53 : vector<16x16xf32> to vector<1x16x16xf32>
    tpu.vector_store %arg6[%c0_22, %c0_23, %c0_24], %56 {strides = array<i32>} : memref<2x16x16xf32, #tpu.memory_space<vmem>>, vector<1x16x16xf32>,
    %c1 = arith.constant 1 : index
    %c0_25 = arith.constant 0 : index
    %c0_26 = arith.constant 0 : index
    %57 = vector.load %arg1[%c1, %c0_25, %c0_26] : memref<2x8x16xf32, #tpu.memory_space<vmem>>, vector<1x8x16xf32>
    %58 = vector.shape_cast %57 : vector<1x8x16xf32> to vector<8x16xf32>
    %cst_27 = arith.constant 0.000000e+00 : f32
    %59 = vector.broadcast %cst_27 : f32 to vector<8x1xf32>
    %60 = vector.extract_strided_slice %58 {offsets = [0, 0], sizes = [8, 15], strides = [1, 1]} : vector<8x16xf32> to vector<8x15xf32>
    %61 = tpu.concatenate %59, %60 in 1 : vector<8x1xf32>, vector<8x15xf32> -> vector<8x16xf32>
    %cst_28 = arith.constant 0.000000e+00 : f32
    %62 = vector.broadcast %cst_28 : f32 to vector<8x1xf32>
    %63 = vector.extract_strided_slice %58 {offsets = [0, 1], sizes = [8, 15], strides = [1, 1]} : vector<8x16xf32> to vector<8x15xf32>
    %64 = tpu.concatenate %63, %62 in 1 : vector<8x15xf32>, vector<8x1xf32> -> vector<8x16xf32>
    %65 = tpu.concatenate %61, %58, %64 in 0 : vector<8x16xf32>, vector<8x16xf32>, vector<8x16xf32> -> vector<24x16xf32>
    %cst_29 = arith.constant dense<0.000000e+00> : vector<16x16xf32>
    %66 = tpu.matmul %0, %65, %cst_29 {dimension_numbers = #tpu.dot_dimension_numbers<[1], [0], [0], [1], [0, 0, 1, 1], [], []>} : vector<16x24xf32>, vector<24x16xf32>, vector<16x16xf32> -> vector<16x16xf32>
    %67 = vector.broadcast %1 : vector<16x1xf32> to vector<16x16xf32>
    %68 = arith.addf %66, %67 : vector<16x16xf32>
    %69 = vector.shape_cast %68 : vector<16x16xf32> to vector<8x2x16xf32>
    %cst_30 = arith.constant dense<0.000000e+00> : vector<8x2xf32>
    %70 = vector.multi_reduction <add>, %69, %cst_30 [2] : vector<8x2x16xf32> to vector<8x2xf32>
    %71 = vector.shape_cast %70 : vector<8x2xf32> to vector<8x2x1xf32>
    %cst_31 = arith.constant dense<0.000000e+00> : vector<8x1xf32>
    %72 = vector.multi_reduction <add>, %71, %cst_31 [1] : vector<8x2x1xf32> to vector<8x1xf32>
    %73 = vector.shape_cast %72 : vector<8x1xf32> to vector<8x1x1xf32>
    %cst_32 = arith.constant 3.125000e-02 : f32
    %74 = vector.broadcast %cst_32 : f32 to vector<8x1x1xf32>
    %75 = arith.mulf %73, %74 : vector<8x1x1xf32>
    %76 = vector.broadcast %75 : vector<8x1x1xf32> to vector<8x2x16xf32>
    %77 = arith.subf %69, %76 : vector<8x2x16xf32>
    %78 = arith.mulf %77, %77 : vector<8x2x16xf32>
    %cst_33 = arith.constant dense<0.000000e+00> : vector<8x2xf32>
    %79 = vector.multi_reduction <add>, %78, %cst_33 [2] : vector<8x2x16xf32> to vector<8x2xf32>
    %80 = vector.shape_cast %79 : vector<8x2xf32> to vector<8x2x1xf32>
    %cst_34 = arith.constant dense<0.000000e+00> : vector<8x1xf32>
    %81 = vector.multi_reduction <add>, %80, %cst_34 [1] : vector<8x2x1xf32> to vector<8x1xf32>
    %82 = vector.shape_cast %81 : vector<8x1xf32> to vector<8x1x1xf32>
    %cst_35 = arith.constant 3.125000e-02 : f32
    %83 = vector.broadcast %cst_35 : f32 to vector<8x1x1xf32>
    %84 = arith.mulf %82, %83 : vector<8x1x1xf32>
    %cst_36 = arith.constant 9.99999974E-6 : f32
    %85 = vector.broadcast %cst_36 : f32 to vector<8x1x1xf32>
    %86 = arith.addf %84, %85 : vector<8x1x1xf32>
    %87 = math.rsqrt %86 : vector<8x1x1xf32>
    %88 = vector.broadcast %87 : vector<8x1x1xf32> to vector<8x2x16xf32>
    %89 = arith.mulf %77, %88 : vector<8x2x16xf32>
    %90 = vector.shape_cast %89 : vector<8x2x16xf32> to vector<16x16xf32>
    %91 = vector.broadcast %2 : vector<16x1xf32> to vector<16x16xf32>
    %92 = arith.mulf %90, %91 : vector<16x16xf32>
    %93 = vector.broadcast %3 : vector<16x1xf32> to vector<16x16xf32>
    %94 = arith.addf %92, %93 : vector<16x16xf32>
    %cst_37 = arith.constant 0.000000e+00 : f32
    %95 = vector.broadcast %cst_37 : f32 to vector<16x16xf32>
    %96 = arith.maximumf %94, %95 : vector<16x16xf32>
    %97 = math.absf %94 : vector<16x16xf32>
    %cst_38 = arith.constant 0.000000e+00 : f32
    %98 = vector.broadcast %cst_38 : f32 to vector<16x16xf32>
    %99 = arith.subf %98, %97 : vector<16x16xf32>
    %100 = math.exp %99 : vector<16x16xf32>
    %cst_39 = arith.constant 1.000000e+00 : f32
    %101 = vector.broadcast %cst_39 : f32 to vector<16x16xf32>
    %102 = arith.addf %101, %100 : vector<16x16xf32>
    %103 = math.log %102 : vector<16x16xf32>
    %104 = arith.addf %96, %103 : vector<16x16xf32>
    %105 = math.tanh %104 : vector<16x16xf32>
    %106 = arith.mulf %94, %105 : vector<16x16xf32>
    %c1_40 = arith.constant 1 : index
    %c0_41 = arith.constant 0 : index
    %c0_42 = arith.constant 0 : index
    %107 = vector.load %arg6[%c1_40, %c0_41, %c0_42] : memref<2x16x16xf32, #tpu.memory_space<vmem>>, vector<1x16x16xf32>
    %108 = vector.shape_cast %107 : vector<1x16x16xf32> to vector<16x16xf32>
    %109 = vector.shape_cast %106 : vector<16x16xf32> to vector<1x16x16xf32>
    tpu.vector_store %arg6[%c1_40, %c0_41, %c0_42], %109 {strides = array<i32>} : memref<2x16x16xf32, #tpu.memory_space<vmem>>, vector<1x16x16xf32>,
    return
  }
  func.func @transform_0(%arg0: i32) -> (i32, i32, i32) {
    %c0_i32 = arith.constant 0 : i32
    %c0_i32_0 = arith.constant 0 : i32
    %c0_i32_1 = arith.constant 0 : i32
    return %arg0, %c0_i32, %c0_i32_0 : i32, i32, i32
  }
  func.func @transform_1(%arg0: i32) -> (i32, i32) {
    %c0_i32 = arith.constant 0 : i32
    %c0_i32_0 = arith.constant 0 : i32
    %c0_i32_1 = arith.constant 0 : i32
    return %c0_i32, %c0_i32_0 : i32, i32
  }
  func.func @transform_2(%arg0: i32) -> (i32, i32) {
    %c0_i32 = arith.constant 0 : i32
    %c0_i32_0 = arith.constant 0 : i32
    %c0_i32_1 = arith.constant 0 : i32
    return %c0_i32, %c0_i32_0 : i32, i32
  }
  func.func @transform_3(%arg0: i32) -> (i32, i32) {
    %c0_i32 = arith.constant 0 : i32
    %c0_i32_0 = arith.constant 0 : i32
    %c0_i32_1 = arith.constant 0 : i32
    return %c0_i32, %c0_i32_0 : i32, i32
  }
  func.func @transform_4(%arg0: i32) -> (i32, i32) {
    %c0_i32 = arith.constant 0 : i32
    %c0_i32_0 = arith.constant 0 : i32
    %c0_i32_1 = arith.constant 0 : i32
    return %c0_i32, %c0_i32_0 : i32, i32
  }
  func.func @transform_5(%arg0: i32) -> (i32, i32, i32) {
    %c0_i32 = arith.constant 0 : i32
    %c0_i32_0 = arith.constant 0 : i32
    %c0_i32_1 = arith.constant 0 : i32
    return %arg0, %c0_i32, %c0_i32_0 : i32, i32, i32
  }
}

</mosaic_0001>

<llo_original>
// kernel: tpu_custom_call.1
$region0: #{tpu_custom_call.1}
  #allocation0 [shape = 'u32[]', space=smem, size = 0x4, offset = 0x4, fixed_abs, tag = 'smem constant byte address 0x4 - core index']
  #allocation1 [shape = 'u32[72,128]{1,0:T(1,128)}', space=vmem, size = 0x9000, scoped, tag = 'internal scratch']
  %s0 = inlined_call_operand.vmem [shape: f32[2,8,16], index: 0, kind: input, shape index: {}]
  %s1 = inlined_call_operand.vmem [shape: f32[16,24], index: 1, kind: input, shape index: {}]
  %s2 = inlined_call_operand.vmem [shape: f32[16,1], index: 2, kind: input, shape index: {}]
  %s3 = inlined_call_operand.vmem [shape: f32[16,1], index: 3, kind: input, shape index: {}]
  %s4 = inlined_call_operand.vmem [shape: f32[16,1], index: 4, kind: input, shape index: {}]
  %s5 = inlined_call_operand.hbm [shape: f32[2,16,16], index: 5, kind: output, shape index: {}]
  %s6 = sld [smem:[#allocation0]]
  $region30: #{tpu_custom_call.1} parent=0
    _
  %s8 = ssub.s32 1, %s6
  %s9 = scalar_select 0, %s8, %s6
  $region1: #{tpu_custom_call.1} parent=0
    #allocation2 [shape = 'u8[16384]{0}', space=vmem, size = 0x4000, scoped, tag = 'output window, operand 0, single buffered']
    #allocation3 [shape = 's32[1]{0}', space=sflag, size = 0x4, scoped, tag = 'scoped memory for tpu_custom_call.1']
    %10 = vsyncpa [#allocation3], 0
    // Predicated region
    $region2: #{tpu_custom_call.1} parent=1 // pred_check
      _
    $region3: #{tpu_custom_call.1} parent=1 // pred_check_branch
      %12 = sbr.rel (0) target = $region5
    $region4: #{tpu_custom_call.1} parent=1 // pred_region
      _
    $region5: #{tpu_custom_call.1} parent=1 // pred_fallthru
      _
    // Predicated region
    $region6: #{tpu_custom_call.1} parent=1 // pred_check
      _
    $region7: #{tpu_custom_call.1} parent=1 // pred_check_branch
      %14 = sbr.rel (0) target = $region9
    $region8: #{tpu_custom_call.1} parent=1 // pred_region
      _
    $region9: #{tpu_custom_call.1} parent=1 // pred_fallthru
      _
    // Predicated region
    $region10: #{tpu_custom_call.1} parent=1 // pred_check
      _
    $region11: #{tpu_custom_call.1} parent=1 // pred_check_branch
      %16 = sbr.rel (0) target = $region13
    $region12: #{tpu_custom_call.1} parent=1 // pred_region
      _
    $region13: #{tpu_custom_call.1} parent=1 // pred_fallthru
      _
    // Predicated region
    $region14: #{tpu_custom_call.1} parent=1 // pred_check
      _
    $region15: #{tpu_custom_call.1} parent=1 // pred_check_branch
      %18 = sbr.rel (0) target = $region17
    $region16: #{tpu_custom_call.1} parent=1 // pred_region
      _
    $region17: #{tpu_custom_call.1} parent=1 // pred_fallthru
      _
    // Predicated region
    $region18: #{tpu_custom_call.1} parent=1 // pred_check
      _
    $region19: #{tpu_custom_call.1} parent=1 // pred_check_branch
      %20 = sbr.rel (0) target = $region21
    $region20: #{tpu_custom_call.1} parent=1 // pred_region
      _
    $region21: #{tpu_custom_call.1} parent=1 // pred_fallthru
      _
    %v21 = vld [vmem:[%s1] sm:$0xff]
    %v22 = vld [vmem:[%s1 + $0x8] sm:$0xff]
    %v23 = vld [vmem:[%s2] sm:$0xff]
    %v24 = vld [vmem:[%s2 + $0x8] sm:$0xff]
    %v25 = vld [vmem:[%s3] sm:$0xff]
    %v26 = vld [vmem:[%s3 + $0x8] sm:$0xff]
    %v27 = vld [vmem:[%s4] sm:$0xff]
    %v28 = vld [vmem:[%s4 + $0x8] sm:$0xff]
    %v29 = vld [vmem:[%s0] sm:$0xff]
    %31 = vrot.lane.b32.xlu0 %v29, 1
    %v32 = vpop.permute.xlu0 %31
    %vm34 = vcmask 7168
    %v35 = vsel %vm34, 0.0, %v32
    %36 = vrot.lane.b32.xlu0 %v29, 127
    %v37 = vpop.permute.xlu0 %36
    %vm39 = vcmask 121856
    %v40 = vsel %vm39, %v37, 0.0
    %42 = vset.pattern.permute.xlu0 0
    %43 = vperm.xlu0 %42, %v23
    %v44 = vpop.permute.xlu0 %43
    %47 = vset.pattern.permute.xlu0 0
    %48 = vperm.xlu0 %47, %v24
    %v49 = vpop.permute.xlu0 %48
    %vm51 = vcmask 195584
    %v53 = vsel %vm51, %v21, 0
    %v56 = vsel %vm51, %v22, 0
    %58 = vmatpush.msra.mxu0 0.0
    %59 = vmatpush.msra.mxu0 0.0
    %60 = vmatpush.msra.mxu0 0.0
    %61 = vmatpush.msra.mxu0 0.0
    %62 = vmatpush.msra.mxu0 0.0
    %63 = vmatpush.msra.mxu0 0.0
    %64 = vmatpush.msra.mxu0 0.0
    %65 = vmatpush.msra.mxu0 0.0
    %66 = vmatpush.msra.mxu0 0.0
    %67 = vmatpush.msra.mxu0 0.0
    %68 = vmatpush.msra.mxu0 0.0
    %69 = vmatpush.msra.mxu0 0.0
    %70 = vmatpush.msra.mxu0 0.0
    %71 = vmatpush.msra.mxu0 %v40
    %72 = vmatpush.msra.mxu0 %v29
    %73 = vmatpush.msra.mxu0 %v35
    %74 = vmatmul.f32.gmra.mxu0 %v53
    %v75 = vpop.f32.mrf.mxu0
    %v76 = vadd.f32 %v44, %v75
    %77 = vmatmul.f32.gmra.mxu0 %v56
    %v78 = vpop.f32.mrf.mxu0
    %v79 = vadd.f32 %v49, %v78
    %80 = vdwg.mxu0
    %v83 = vrot.slane %v76, 2
    %v84 = vrot.slane %v76, 4
    %v85 = vrot.slane %v76, 6
    %v86 = vrot.slane %v79, 2
    %v87 = vrot.slane %v79, 4
    %v88 = vrot.slane %v79, 6
    %vm95 = vcmask 123904
    %v96 = vsel %vm95, %v76, 0.0
    %97 = vadd.xlane.f32.xlu0 %v96
    %v98 = vpop.xlane.xlu0 %97
    %v99 = vsel %vm95, %v83, 0.0
    %100 = vadd.xlane.f32.xlu0 %v99
    %v101 = vpop.xlane.xlu0 %100
    %v102 = vsel %vm95, %v84, 0.0
    %103 = vadd.xlane.f32.xlu0 %v102
    %v104 = vpop.xlane.xlu0 %103
    %v105 = vsel %vm95, %v85, 0.0
    %106 = vadd.xlane.f32.xlu0 %v105
    %v107 = vpop.xlane.xlu0 %106
    %v108 = vsel %vm95, %v79, 0.0
    %109 = vadd.xlane.f32.xlu0 %v108
    %v110 = vpop.xlane.xlu0 %109
    %v111 = vsel %vm95, %v86, 0.0
    %112 = vadd.xlane.f32.xlu0 %v111
    %v113 = vpop.xlane.xlu0 %112
    %v114 = vsel %vm95, %v87, 0.0
    %115 = vadd.xlane.f32.xlu0 %v114
    %v116 = vpop.xlane.xlu0 %115
    %v117 = vsel %vm95, %v88, 0.0
    %118 = vadd.xlane.f32.xlu0 %v117
    %v119 = vpop.xlane.xlu0 %118
    %vm120 = vcmask 1041408
    %v121 = vsel %vm120, %v98, 0.0
    %v122 = vrot.slane %v121, 4
    %v123 = vadd.f32 %v121, %v122
    %v124 = vrot.slane %v123, 2
    %v125 = vadd.f32 %v123, %v124
    %v126 = vrot.slane %v125, 1
    %v127 = vadd.f32 %v125, %v126
    %v128 = vsel %vm120, %v101, 0.0
    %v129 = vrot.slane %v128, 4
    %v130 = vadd.f32 %v128, %v129
    %v131 = vrot.slane %v130, 2
    %v132 = vadd.f32 %v130, %v131
    %v133 = vrot.slane %v132, 1
    %v134 = vadd.f32 %v132, %v133
    %v135 = vsel %vm120, %v104, 0.0
    %v136 = vrot.slane %v135, 4
    %v137 = vadd.f32 %v135, %v136
    %v138 = vrot.slane %v137, 2
    %v139 = vadd.f32 %v137, %v138
    %v140 = vrot.slane %v139, 1
    %v141 = vadd.f32 %v139, %v140
    %v142 = vsel %vm120, %v107, 0.0
    %v143 = vrot.slane %v142, 4
    %v144 = vadd.f32 %v142, %v143
    %v145 = vrot.slane %v144, 2
    %v146 = vadd.f32 %v144, %v145
    %v147 = vrot.slane %v146, 1
    %v148 = vadd.f32 %v146, %v147
    %v149 = vsel %vm120, %v110, 0.0
    %v150 = vrot.slane %v149, 4
    %v151 = vadd.f32 %v149, %v150
    %v152 = vrot.slane %v151, 2
    %v153 = vadd.f32 %v151, %v152
    %v154 = vrot.slane %v153, 1
    %v155 = vadd.f32 %v153, %v154
    %v156 = vsel %vm120, %v113, 0.0
    %v157 = vrot.slane %v156, 4
    %v158 = vadd.f32 %v156, %v157
    %v159 = vrot.slane %v158, 2
    %v160 = vadd.f32 %v158, %v159
    %v161 = vrot.slane %v160, 1
    %v162 = vadd.f32 %v160, %v161
    %v163 = vsel %vm120, %v116, 0.0
    %v164 = vrot.slane %v163, 4
    %v165 = vadd.f32 %v163, %v164
    %v166 = vrot.slane %v165, 2
    %v167 = vadd.f32 %v165, %v166
    %v168 = vrot.slane %v167, 1
    %v169 = vadd.f32 %v167, %v168
    %v170 = vsel %vm120, %v119, 0.0
    %v171 = vrot.slane %v170, 4
    %v172 = vadd.f32 %v170, %v171
    %v173 = vrot.slane %v172, 2
    %v174 = vadd.f32 %v172, %v173
    %v175 = vrot.slane %v174, 1
    %v176 = vadd.f32 %v174, %v175
    %v177 = vmul.f32 %v127, 0.03125
    %v178 = vmul.f32 %v134, 0.03125
    %v179 = vmul.f32 %v141, 0.03125
    %v180 = vmul.f32 %v148, 0.03125
    %v181 = vmul.f32 %v155, 0.03125
    %v182 = vmul.f32 %v162, 0.03125
    %v183 = vmul.f32 %v169, 0.03125
    %v184 = vmul.f32 %v176, 0.03125
    %v185 = vsub.f32 %v76, %v177
    %v186 = vsub.f32 %v83, %v178
    %v187 = vsub.f32 %v84, %v179
    %v188 = vsub.f32 %v85, %v180
    %v189 = vsub.f32 %v79, %v181
    %v190 = vsub.f32 %v86, %v182
    %v191 = vsub.f32 %v87, %v183
    %v192 = vsub.f32 %v88, %v184
    %v193 = vmul.f32 %v185, %v185
    %v194 = vmul.f32 %v186, %v186
    %v195 = vmul.f32 %v187, %v187
    %v196 = vmul.f32 %v188, %v188
    %v197 = vmul.f32 %v189, %v189
    %v198 = vmul.f32 %v190, %v190
    %v199 = vmul.f32 %v191, %v191
    %v200 = vmul.f32 %v192, %v192
    %v201 = vsel %vm95, %v193, 0.0
    %202 = vadd.xlane.f32.xlu0 %v201
    %v203 = vpop.xlane.xlu0 %202
    %v204 = vsel %vm95, %v194, 0.0
    %205 = vadd.xlane.f32.xlu0 %v204
    %v206 = vpop.xlane.xlu0 %205
    %v207 = vsel %vm95, %v195, 0.0
    %208 = vadd.xlane.f32.xlu0 %v207
    %v209 = vpop.xlane.xlu0 %208
    %v210 = vsel %vm95, %v196, 0.0
    %211 = vadd.xlane.f32.xlu0 %v210
    %v212 = vpop.xlane.xlu0 %211
    %v213 = vsel %vm95, %v197, 0.0
    %214 = vadd.xlane.f32.xlu0 %v213
    %v215 = vpop.xlane.xlu0 %214
    %v216 = vsel %vm95, %v198, 0.0
    %217 = vadd.xlane.f32.xlu0 %v216
    %v218 = vpop.xlane.xlu0 %217
    %v219 = vsel %vm95, %v199, 0.0
    %220 = vadd.xlane.f32.xlu0 %v219
    %v221 = vpop.xlane.xlu0 %220
    %v222 = vsel %vm95, %v200, 0.0
    %223 = vadd.xlane.f32.xlu0 %v222
    %v224 = vpop.xlane.xlu0 %223
    %v225 = vsel %vm120, %v203, 0.0
    %v226 = vrot.slane %v225, 4
    %v227 = vadd.f32 %v225, %v226
    %v228 = vrot.slane %v227, 2
    %v229 = vadd.f32 %v227, %v228
    %v230 = vrot.slane %v229, 1
    %v231 = vadd.f32 %v229, %v230
    %v232 = vsel %vm120, %v206, 0.0
    %v233 = vrot.slane %v232, 4
    %v234 = vadd.f32 %v232, %v233
    %v235 = vrot.slane %v234, 2
    %v236 = vadd.f32 %v234, %v235
    %v237 = vrot.slane %v236, 1
    %v238 = vadd.f32 %v236, %v237
    %v239 = vsel %vm120, %v209, 0.0
    %v240 = vrot.slane %v239, 4
    %v241 = vadd.f32 %v239, %v240
    %v242 = vrot.slane %v241, 2
    %v243 = vadd.f32 %v241, %v242
    %v244 = vrot.slane %v243, 1
    %v245 = vadd.f32 %v243, %v244
    %v246 = vsel %vm120, %v212, 0.0
    %v247 = vrot.slane %v246, 4
    %v248 = vadd.f32 %v246, %v247
    %v249 = vrot.slane %v248, 2
    %v250 = vadd.f32 %v248, %v249
    %v251 = vrot.slane %v250, 1
    %v252 = vadd.f32 %v250, %v251
    %v253 = vsel %vm120, %v215, 0.0
    %v254 = vrot.slane %v253, 4
    %v255 = vadd.f32 %v253, %v254
    %v256 = vrot.slane %v255, 2
    %v257 = vadd.f32 %v255, %v256
    %v258 = vrot.slane %v257, 1
    %v259 = vadd.f32 %v257, %v258
    %v260 = vsel %vm120, %v218, 0.0
    %v261 = vrot.slane %v260, 4
    %v262 = vadd.f32 %v260, %v261
    %v263 = vrot.slane %v262, 2
    %v264 = vadd.f32 %v262, %v263
    %v265 = vrot.slane %v264, 1
    %v266 = vadd.f32 %v264, %v265
    %v267 = vsel %vm120, %v221, 0.0
    %v268 = vrot.slane %v267, 4
    %v269 = vadd.f32 %v267, %v268
    %v270 = vrot.slane %v269, 2
    %v271 = vadd.f32 %v269, %v270
    %v272 = vrot.slane %v271, 1
    %v273 = vadd.f32 %v271, %v272
    %v274 = vsel %vm120, %v224, 0.0
    %v275 = vrot.slane %v274, 4
    %v276 = vadd.f32 %v274, %v275
    %v277 = vrot.slane %v276, 2
    %v278 = vadd.f32 %v276, %v277
    %v279 = vrot.slane %v278, 1
    %v280 = vadd.f32 %v278, %v279
    %v281 = vmul.f32 %v231, 0.03125
    %v282 = vmul.f32 %v238, 0.03125
    %v283 = vmul.f32 %v245, 0.03125
    %v284 = vmul.f32 %v252, 0.03125
    %v285 = vmul.f32 %v259, 0.03125
    %v286 = vmul.f32 %v266, 0.03125
    %v287 = vmul.f32 %v273, 0.03125
    %v288 = vmul.f32 %v280, 0.03125
    %v289 = vadd.f32 %v281, 1e-05
    %v290 = vadd.f32 %v282, 1e-05
    %v291 = vadd.f32 %v283, 1e-05
    %v292 = vadd.f32 %v284, 1e-05
    %v293 = vadd.f32 %v285, 1e-05
    %v294 = vadd.f32 %v286, 1e-05
    %v295 = vadd.f32 %v287, 1e-05
    %v296 = vadd.f32 %v288, 1e-05
    %v297 = vrsqrt.pop %v289
    %v298 = vmul.f32 %v297, %v289
    %v299 = vmul.f32 %v298, %v297
    %v300 = vmul.f32 0.5, %v299
    %v301 = vsub.f32 1.5, %v300
    %v302 = vmul.f32 %v297, %v301
    %vm303 = vweird.f32 %v289
    %vm304 = vweird.f32 %v297
    %vm305 = vmor %vm303, %vm304
    %v306 = vsel %vm305, %v297, %v302
    %v307 = vrsqrt.pop %v290
    %v308 = vmul.f32 %v307, %v290
    %v309 = vmul.f32 %v308, %v307
    %v310 = vmul.f32 0.5, %v309
    %v311 = vsub.f32 1.5, %v310
    %v312 = vmul.f32 %v307, %v311
    %vm313 = vweird.f32 %v290
    %vm314 = vweird.f32 %v307
    %vm315 = vmor %vm313, %vm314
    %v316 = vsel %vm315, %v307, %v312
    %v317 = vrsqrt.pop %v291
    %v318 = vmul.f32 %v317, %v291
    %v319 = vmul.f32 %v318, %v317
    %v320 = vmul.f32 0.5, %v319
    %v321 = vsub.f32 1.5, %v320
    %v322 = vmul.f32 %v317, %v321
    %vm323 = vweird.f32 %v291
    %vm324 = vweird.f32 %v317
    %vm325 = vmor %vm323, %vm324
    %v326 = vsel %vm325, %v317, %v322
    %v327 = vrsqrt.pop %v292
    %v328 = vmul.f32 %v327, %v292
    %v329 = vmul.f32 %v328, %v327
    %v330 = vmul.f32 0.5, %v329
    %v331 = vsub.f32 1.5, %v330
    %v332 = vmul.f32 %v327, %v331
    %vm333 = vweird.f32 %v292
    %vm334 = vweird.f32 %v327
    %vm335 = vmor %vm333, %vm334
    %v336 = vsel %vm335, %v327, %v332
    %v337 = vrsqrt.pop %v293
    %v338 = vmul.f32 %v337, %v293
    %v339 = vmul.f32 %v338, %v337
    %v340 = vmul.f32 0.5, %v339
    %v341 = vsub.f32 1.5, %v340
    %v342 = vmul.f32 %v337, %v341
    %vm343 = vweird.f32 %v293
    %vm344 = vweird.f32 %v337
    %vm345 = vmor %vm343, %vm344
    %v346 = vsel %vm345, %v337, %v342
    %v347 = vrsqrt.pop %v294
    %v348 = vmul.f32 %v347, %v294
    %v349 = vmul.f32 %v348, %v347
    %v350 = vmul.f32 0.5, %v349
    %v351 = vsub.f32 1.5, %v350
    %v352 = vmul.f32 %v347, %v351
    %vm353 = vweird.f32 %v294
    %vm354 = vweird.f32 %v347
    %vm355 = vmor %vm353, %vm354
    %v356 = vsel %vm355, %v347, %v352
    %v357 = vrsqrt.pop %v295
    %v358 = vmul.f32 %v357, %v295
    %v359 = vmul.f32 %v358, %v357
    %v360 = vmul.f32 0.5, %v359
    %v361 = vsub.f32 1.5, %v360
    %v362 = vmul.f32 %v357, %v361
    %vm363 = vweird.f32 %v295
    %vm364 = vweird.f32 %v357
    %vm365 = vmor %vm363, %vm364
    %v366 = vsel %vm365, %v357, %v362
    %v367 = vrsqrt.pop %v296
    %v368 = vmul.f32 %v367, %v296
    %v369 = vmul.f32 %v368, %v367
    %v370 = vmul.f32 0.5, %v369
    %v371 = vsub.f32 1.5, %v370
    %v372 = vmul.f32 %v367, %v371
    %vm373 = vweird.f32 %v296
    %vm374 = vweird.f32 %v367
    %vm375 = vmor %vm373, %vm374
    %v376 = vsel %vm375, %v367, %v372
    %v377 = vmul.f32 %v185, %v306
    %v378 = vmul.f32 %v186, %v316
    %v379 = vmul.f32 %v187, %v326
    %v380 = vmul.f32 %v188, %v336
    %v381 = vmul.f32 %v189, %v346
    %v382 = vmul.f32 %v190, %v356
    %v383 = vmul.f32 %v191, %v366
    %v384 = vmul.f32 %v192, %v376
    %386 = vset.pattern.permute.xlu0 0
    %387 = vperm.xlu0 %386, %v25
    %v388 = vpop.permute.xlu0 %387
    %390 = vset.pattern.permute.xlu0 0
    %391 = vperm.xlu0 %390, %v26
    %v392 = vpop.permute.xlu0 %391
    %v394 = vunpack.c.l.s4 269488144
    %v395 = vunpack.c.0.s8 %v394
    %v396 = vperm.slane %v388, %v395
    %v398 = vunpack.c.l.s4 842150450
    %v399 = vunpack.c.0.s8 %v398
    %v400 = vperm.slane %v388, %v399
    %v402 = vunpack.c.l.s4 1414812756
    %v403 = vunpack.c.0.s8 %v402
    %v404 = vperm.slane %v388, %v403
    %v406 = vunpack.c.l.s4 1987475062
    %v407 = vunpack.c.0.s8 %v406
    %v408 = vperm.slane %v388, %v407
    %v410 = vunpack.c.l.s4 269488144
    %v411 = vunpack.c.0.s8 %v410
    %v412 = vperm.slane %v392, %v411
    %v414 = vunpack.c.l.s4 842150450
    %v415 = vunpack.c.0.s8 %v414
    %v416 = vperm.slane %v392, %v415
    %v418 = vunpack.c.l.s4 1414812756
    %v419 = vunpack.c.0.s8 %v418
    %v420 = vperm.slane %v392, %v419
    %v422 = vunpack.c.l.s4 1987475062
    %v423 = vunpack.c.0.s8 %v422
    %v424 = vperm.slane %v392, %v423
    %v433 = vmul.f32 %v377, %v396
    %v434 = vmul.f32 %v378, %v400
    %v435 = vmul.f32 %v379, %v404
    %v436 = vmul.f32 %v380, %v408
    %v437 = vmul.f32 %v381, %v412
    %v438 = vmul.f32 %v382, %v416
    %v439 = vmul.f32 %v383, %v420
    %v440 = vmul.f32 %v384, %v424
    %442 = vset.pattern.permute.xlu0 0
    %443 = vperm.xlu0 %442, %v27
    %v444 = vpop.permute.xlu0 %443
    %446 = vset.pattern.permute.xlu0 0
    %447 = vperm.xlu0 %446, %v28
    %v448 = vpop.permute.xlu0 %447
    %v450 = vunpack.c.l.s4 269488144
    %v451 = vunpack.c.0.s8 %v450
    %v452 = vperm.slane %v444, %v451
    %v454 = vunpack.c.l.s4 842150450
    %v455 = vunpack.c.0.s8 %v454
    %v456 = vperm.slane %v444, %v455
    %v458 = vunpack.c.l.s4 1414812756
    %v459 = vunpack.c.0.s8 %v458
    %v460 = vperm.slane %v444, %v459
    %v462 = vunpack.c.l.s4 1987475062
    %v463 = vunpack.c.0.s8 %v462
    %v464 = vperm.slane %v444, %v463
    %v466 = vunpack.c.l.s4 269488144
    %v467 = vunpack.c.0.s8 %v466
    %v468 = vperm.slane %v448, %v467
    %v470 = vunpack.c.l.s4 842150450
    %v471 = vunpack.c.0.s8 %v470
    %v472 = vperm.slane %v448, %v471
    %v474 = vunpack.c.l.s4 1414812756
    %v475 = vunpack.c.0.s8 %v474
    %v476 = vperm.slane %v448, %v475
    %v478 = vunpack.c.l.s4 1987475062
    %v479 = vunpack.c.0.s8 %v478
    %v480 = vperm.slane %v448, %v479
    %v489 = vadd.f32 %v433, %v452
    %v490 = vadd.f32 %v434, %v456
    %v491 = vadd.f32 %v435, %v460
    %v492 = vadd.f32 %v436, %v464
    %v493 = vadd.f32 %v437, %v468
    %v494 = vadd.f32 %v438, %v472
    %v495 = vadd.f32 %v439, %v476
    %v496 = vadd.f32 %v440, %v480
    %v497 = vmax.f32 %v489, 0.0
    %v498 = vmax.f32 %v490, 0.0
    %v499 = vmax.f32 %v491, 0.0
    %v500 = vmax.f32 %v492, 0.0
    %v501 = vmax.f32 %v493, 0.0
    %v502 = vmax.f32 %v494, 0.0
    %v503 = vmax.f32 %v495, 0.0
    %v504 = vmax.f32 %v496, 0.0
    %v505 = vand.u32 2147483647, %v489
    %v506 = vand.u32 2147483647, %v490
    %v507 = vand.u32 2147483647, %v491
    %v508 = vand.u32 2147483647, %v492
    %v509 = vand.u32 2147483647, %v493
    %v510 = vand.u32 2147483647, %v494
    %v511 = vand.u32 2147483647, %v495
    %v512 = vand.u32 2147483647, %v496
    %v513 = vsub.f32 0.0, %v505
    %v514 = vsub.f32 0.0, %v506
    %v515 = vsub.f32 0.0, %v507
    %v516 = vsub.f32 0.0, %v508
    %v517 = vsub.f32 0.0, %v509
    %v518 = vsub.f32 0.0, %v510
    %v519 = vsub.f32 0.0, %v511
    %v520 = vsub.f32 0.0, %v512
    %v521 = vmul.f32 %v513, 1.442695
    %v522 = vpow.pop %v521
    %v523 = vmul.f32 %v514, 1.442695
    %v524 = vpow.pop %v523
    %v525 = vmul.f32 %v515, 1.442695
    %v526 = vpow.pop %v525
    %v527 = vmul.f32 %v516, 1.442695
    %v528 = vpow.pop %v527
    %v529 = vmul.f32 %v517, 1.442695
    %v530 = vpow.pop %v529
    %v531 = vmul.f32 %v518, 1.442695
    %v532 = vpow.pop %v531
    %v533 = vmul.f32 %v519, 1.442695
    %v534 = vpow.pop %v533
    %v535 = vmul.f32 %v520, 1.442695
    %v536 = vpow.pop %v535
    %v537 = vadd.f32 %v522, 1.0
    %v538 = vadd.f32 %v524, 1.0
    %v539 = vadd.f32 %v526, 1.0
    %v540 = vadd.f32 %v528, 1.0
    %v541 = vadd.f32 %v530, 1.0
    %v542 = vadd.f32 %v532, 1.0
    %v543 = vadd.f32 %v534, 1.0
    %v544 = vadd.f32 %v536, 1.0
    %v545 = vlog2.pop %v537
    %v546 = vmul.f32 %v545, 0.6931472
    %v547 = vlog2.pop %v538
    %v548 = vmul.f32 %v547, 0.6931472
    %v549 = vlog2.pop %v539
    %v550 = vmul.f32 %v549, 0.6931472
    %v551 = vlog2.pop %v540
    %v552 = vmul.f32 %v551, 0.6931472
    %v553 = vlog2.pop %v541
    %v554 = vmul.f32 %v553, 0.6931472
    %v555 = vlog2.pop %v542
    %v556 = vmul.f32 %v555, 0.6931472
    %v557 = vlog2.pop %v543
    %v558 = vmul.f32 %v557, 0.6931472
    %v559 = vlog2.pop %v544
    %v560 = vmul.f32 %v559, 0.6931472
    %v561 = vadd.f32 %v497, %v546
    %v562 = vadd.f32 %v498, %v548
    %v563 = vadd.f32 %v499, %v550
    %v564 = vadd.f32 %v500, %v552
    %v565 = vadd.f32 %v501, %v554
    %v566 = vadd.f32 %v502, %v556
    %v567 = vadd.f32 %v503, %v558
    %v568 = vadd.f32 %v504, %v560
    %v569 = vtanh.pop %v561
    %v570 = vtanh.pop %v562
    %v571 = vtanh.pop %v563
    %v572 = vtanh.pop %v564
    %v573 = vtanh.pop %v565
    %v574 = vtanh.pop %v566
    %v575 = vtanh.pop %v567
    %v576 = vtanh.pop %v568
    %v577 = vmul.f32 %v489, %v569
    %v578 = vmul.f32 %v490, %v570
    %v579 = vmul.f32 %v491, %v571
    %v580 = vmul.f32 %v492, %v572
    %v581 = vmul.f32 %v493, %v573
    %v582 = vmul.f32 %v494, %v574
    %v583 = vmul.f32 %v495, %v575
    %v584 = vmul.f32 %v496, %v576
    %593 = vst [vmem:[#allocation1] ss:$4 sm:$0xff] %v577
    %s594 = scalar_lea.vmem [#allocation1], 1
    %595 = vst [vmem:[%s594] ss:$4 sm:$0xff] %v578
    %s596 = scalar_lea.vmem [#allocation1], 2
    %597 = vst [vmem:[%s596] ss:$4 sm:$0xff] %v579
    %s598 = scalar_lea.vmem [#allocation1], 3
    %599 = vst [vmem:[%s598] ss:$4 sm:$0xff] %v580
    %s600 = scalar_lea.vmem [#allocation1], 32
    %601 = vst [vmem:[%s600] ss:$4 sm:$0xff] %v581
    %s602 = scalar_lea.vmem [#allocation1], 33
    %603 = vst [vmem:[%s602] ss:$4 sm:$0xff] %v582
    %s604 = scalar_lea.vmem [#allocation1], 34
    %605 = vst [vmem:[%s604] ss:$4 sm:$0xff] %v583
    %s606 = scalar_lea.vmem [#allocation1], 35
    %607 = vst [vmem:[%s606] ss:$4 sm:$0xff] %v584
    %v608 = vld.sshfl [vmem:[#allocation1] sm:$0xff pattern:$0x73625140]
    %v609 = vld.sshfl [vmem:[#allocation1 + $0x20] sm:$0xff pattern:$0x73625140]
    %vm612 = vcmask 130048
    %613 = vst.msk [vmem:[#allocation2] sm:$0xff] %vm612, %v608
    %614 = vst.msk [vmem:[#allocation2 + $0x8] sm:$0xff] %vm612, %v609
    %s615 = scalar_lea.vmem %s0, 8
    %v616 = vld [vmem:[%s615] sm:$0xff]
    %618 = vrot.lane.b32.xlu0 %v616, 1
    %v619 = vpop.permute.xlu0 %618
    %v621 = vsel %vm34, 0.0, %v619
    %622 = vrot.lane.b32.xlu0 %v616, 127
    %v623 = vpop.permute.xlu0 %622
    %v625 = vsel %vm39, %v623, 0.0
    %626 = vmatpush.msra.mxu0 0.0
    %627 = vmatpush.msra.mxu0 0.0
    %628 = vmatpush.msra.mxu0 0.0
    %629 = vmatpush.msra.mxu0 0.0
    %630 = vmatpush.msra.mxu0 0.0
    %631 = vmatpush.msra.mxu0 0.0
    %632 = vmatpush.msra.mxu0 0.0
    %633 = vmatpush.msra.mxu0 0.0
    %634 = vmatpush.msra.mxu0 0.0
    %635 = vmatpush.msra.mxu0 0.0
    %636 = vmatpush.msra.mxu0 0.0
    %637 = vmatpush.msra.mxu0 0.0
    %638 = vmatpush.msra.mxu0 0.0
    %639 = vmatpush.msra.mxu0 %v625
    %640 = vmatpush.msra.mxu0 %v616
    %641 = vmatpush.msra.mxu0 %v621
    %642 = vmatmul.f32.gmra.mxu0 %v53
    %v643 = vpop.f32.mrf.mxu0
    %v644 = vadd.f32 %v44, %v643
    %645 = vmatmul.f32.gmra.mxu0 %v56
    %v646 = vpop.f32.mrf.mxu0
    %v647 = vadd.f32 %v49, %v646
    %648 = vdwg.mxu0
    %v651 = vrot.slane %v644, 2
    %v652 = vrot.slane %v644, 4
    %v653 = vrot.slane %v644, 6
    %v654 = vrot.slane %v647, 2
    %v655 = vrot.slane %v647, 4
    %v656 = vrot.slane %v647, 6
    %v663 = vsel %vm95, %v644, 0.0
    %664 = vadd.xlane.f32.xlu0 %v663
    %v665 = vpop.xlane.xlu0 %664
    %v666 = vsel %vm95, %v651, 0.0
    %667 = vadd.xlane.f32.xlu0 %v666
    %v668 = vpop.xlane.xlu0 %667
    %v669 = vsel %vm95, %v652, 0.0
    %670 = vadd.xlane.f32.xlu0 %v669
    %v671 = vpop.xlane.xlu0 %670
    %v672 = vsel %vm95, %v653, 0.0
    %673 = vadd.xlane.f32.xlu0 %v672
    %v674 = vpop.xlane.xlu0 %673
    %v675 = vsel %vm95, %v647, 0.0
    %676 = vadd.xlane.f32.xlu0 %v675
    %v677 = vpop.xlane.xlu0 %676
    %v678 = vsel %vm95, %v654, 0.0
    %679 = vadd.xlane.f32.xlu0 %v678
    %v680 = vpop.xlane.xlu0 %679
    %v681 = vsel %vm95, %v655, 0.0
    %682 = vadd.xlane.f32.xlu0 %v681
    %v683 = vpop.xlane.xlu0 %682
    %v684 = vsel %vm95, %v656, 0.0
    %685 = vadd.xlane.f32.xlu0 %v684
    %v686 = vpop.xlane.xlu0 %685
    %v687 = vsel %vm120, %v665, 0.0
    %v688 = vrot.slane %v687, 4
    %v689 = vadd.f32 %v687, %v688
    %v690 = vrot.slane %v689, 2
    %v691 = vadd.f32 %v689, %v690
    %v692 = vrot.slane %v691, 1
    %v693 = vadd.f32 %v691, %v692
    %v694 = vsel %vm120, %v668, 0.0
    %v695 = vrot.slane %v694, 4
    %v696 = vadd.f32 %v694, %v695
    %v697 = vrot.slane %v696, 2
    %v698 = vadd.f32 %v696, %v697
    %v699 = vrot.slane %v698, 1
    %v700 = vadd.f32 %v698, %v699
    %v701 = vsel %vm120, %v671, 0.0
    %v702 = vrot.slane %v701, 4
    %v703 = vadd.f32 %v701, %v702
    %v704 = vrot.slane %v703, 2
    %v705 = vadd.f32 %v703, %v704
    %v706 = vrot.slane %v705, 1
    %v707 = vadd.f32 %v705, %v706
    %v708 = vsel %vm120, %v674, 0.0
    %v709 = vrot.slane %v708, 4
    %v710 = vadd.f32 %v708, %v709
    %v711 = vrot.slane %v710, 2
    %v712 = vadd.f32 %v710, %v711
    %v713 = vrot.slane %v712, 1
    %v714 = vadd.f32 %v712, %v713
    %v715 = vsel %vm120, %v677, 0.0
    %v716 = vrot.slane %v715, 4
    %v717 = vadd.f32 %v715, %v716
    %v718 = vrot.slane %v717, 2
    %v719 = vadd.f32 %v717, %v718
    %v720 = vrot.slane %v719, 1
    %v721 = vadd.f32 %v719, %v720
    %v722 = vsel %vm120, %v680, 0.0
    %v723 = vrot.slane %v722, 4
    %v724 = vadd.f32 %v722, %v723
    %v725 = vrot.slane %v724, 2
    %v726 = vadd.f32 %v724, %v725
    %v727 = vrot.slane %v726, 1
    %v728 = vadd.f32 %v726, %v727
    %v729 = vsel %vm120, %v683, 0.0
    %v730 = vrot.slane %v729, 4
    %v731 = vadd.f32 %v729, %v730
    %v732 = vrot.slane %v731, 2
    %v733 = vadd.f32 %v731, %v732
    %v734 = vrot.slane %v733, 1
    %v735 = vadd.f32 %v733, %v734
    %v736 = vsel %vm120, %v686, 0.0
    %v737 = vrot.slane %v736, 4
    %v738 = vadd.f32 %v736, %v737
    %v739 = vrot.slane %v738, 2
    %v740 = vadd.f32 %v738, %v739
    %v741 = vrot.slane %v740, 1
    %v742 = vadd.f32 %v740, %v741
    %v743 = vmul.f32 %v693, 0.03125
    %v744 = vmul.f32 %v700, 0.03125
    %v745 = vmul.f32 %v707, 0.03125
    %v746 = vmul.f32 %v714, 0.03125
    %v747 = vmul.f32 %v721, 0.03125
    %v748 = vmul.f32 %v728, 0.03125
    %v749 = vmul.f32 %v735, 0.03125
    %v750 = vmul.f32 %v742, 0.03125
    %v751 = vsub.f32 %v644, %v743
    %v752 = vsub.f32 %v651, %v744
    %v753 = vsub.f32 %v652, %v745
    %v754 = vsub.f32 %v653, %v746
    %v755 = vsub.f32 %v647, %v747
    %v756 = vsub.f32 %v654, %v748
    %v757 = vsub.f32 %v655, %v749
    %v758 = vsub.f32 %v656, %v750
    %v759 = vmul.f32 %v751, %v751
    %v760 = vmul.f32 %v752, %v752
    %v761 = vmul.f32 %v753, %v753
    %v762 = vmul.f32 %v754, %v754
    %v763 = vmul.f32 %v755, %v755
    %v764 = vmul.f32 %v756, %v756
    %v765 = vmul.f32 %v757, %v757
    %v766 = vmul.f32 %v758, %v758
    %v767 = vsel %vm95, %v759, 0.0
    %768 = vadd.xlane.f32.xlu0 %v767
    %v769 = vpop.xlane.xlu0 %768
    %v770 = vsel %vm95, %v760, 0.0
    %771 = vadd.xlane.f32.xlu0 %v770
    %v772 = vpop.xlane.xlu0 %771
    %v773 = vsel %vm95, %v761, 0.0
    %774 = vadd.xlane.f32.xlu0 %v773
    %v775 = vpop.xlane.xlu0 %774
    %v776 = vsel %vm95, %v762, 0.0
    %777 = vadd.xlane.f32.xlu0 %v776
    %v778 = vpop.xlane.xlu0 %777
    %v779 = vsel %vm95, %v763, 0.0
    %780 = vadd.xlane.f32.xlu0 %v779
    %v781 = vpop.xlane.xlu0 %780
    %v782 = vsel %vm95, %v764, 0.0
    %783 = vadd.xlane.f32.xlu0 %v782
    %v784 = vpop.xlane.xlu0 %783
    %v785 = vsel %vm95, %v765, 0.0
    %786 = vadd.xlane.f32.xlu0 %v785
    %v787 = vpop.xlane.xlu0 %786
    %v788 = vsel %vm95, %v766, 0.0
    %789 = vadd.xlane.f32.xlu0 %v788
    %v790 = vpop.xlane.xlu0 %789
    %v791 = vsel %vm120, %v769, 0.0
    %v792 = vrot.slane %v791, 4
    %v793 = vadd.f32 %v791, %v792
    %v794 = vrot.slane %v793, 2
    %v795 = vadd.f32 %v793, %v794
    %v796 = vrot.slane %v795, 1
    %v797 = vadd.f32 %v795, %v796
    %v798 = vsel %vm120, %v772, 0.0
    %v799 = vrot.slane %v798, 4
    %v800 = vadd.f32 %v798, %v799
    %v801 = vrot.slane %v800, 2
    %v802 = vadd.f32 %v800, %v801
    %v803 = vrot.slane %v802, 1
    %v804 = vadd.f32 %v802, %v803
    %v805 = vsel %vm120, %v775, 0.0
    %v806 = vrot.slane %v805, 4
    %v807 = vadd.f32 %v805, %v806
    %v808 = vrot.slane %v807, 2
    %v809 = vadd.f32 %v807, %v808
    %v810 = vrot.slane %v809, 1
    %v811 = vadd.f32 %v809, %v810
    %v812 = vsel %vm120, %v778, 0.0
    %v813 = vrot.slane %v812, 4
    %v814 = vadd.f32 %v812, %v813
    %v815 = vrot.slane %v814, 2
    %v816 = vadd.f32 %v814, %v815
    %v817 = vrot.slane %v816, 1
    %v818 = vadd.f32 %v816, %v817
    %v819 = vsel %vm120, %v781, 0.0
    %v820 = vrot.slane %v819, 4
    %v821 = vadd.f32 %v819, %v820
    %v822 = vrot.slane %v821, 2
    %v823 = vadd.f32 %v821, %v822
    %v824 = vrot.slane %v823, 1
    %v825 = vadd.f32 %v823, %v824
    %v826 = vsel %vm120, %v784, 0.0
    %v827 = vrot.slane %v826, 4
    %v828 = vadd.f32 %v826, %v827
    %v829 = vrot.slane %v828, 2
    %v830 = vadd.f32 %v828, %v829
    %v831 = vrot.slane %v830, 1
    %v832 = vadd.f32 %v830, %v831
    %v833 = vsel %vm120, %v787, 0.0
    %v834 = vrot.slane %v833, 4
    %v835 = vadd.f32 %v833, %v834
    %v836 = vrot.slane %v835, 2
    %v837 = vadd.f32 %v835, %v836
    %v838 = vrot.slane %v837, 1
    %v839 = vadd.f32 %v837, %v838
    %v840 = vsel %vm120, %v790, 0.0
    %v841 = vrot.slane %v840, 4
    %v842 = vadd.f32 %v840, %v841
    %v843 = vrot.slane %v842, 2
    %v844 = vadd.f32 %v842, %v843
    %v845 = vrot.slane %v844, 1
    %v846 = vadd.f32 %v844, %v845
    %v847 = vmul.f32 %v797, 0.03125
    %v848 = vmul.f32 %v804, 0.03125
    %v849 = vmul.f32 %v811, 0.03125
    %v850 = vmul.f32 %v818, 0.03125
    %v851 = vmul.f32 %v825, 0.03125
    %v852 = vmul.f32 %v832, 0.03125
    %v853 = vmul.f32 %v839, 0.03125
    %v854 = vmul.f32 %v846, 0.03125
    %v855 = vadd.f32 %v847, 1e-05
    %v856 = vadd.f32 %v848, 1e-05
    %v857 = vadd.f32 %v849, 1e-05
    %v858 = vadd.f32 %v850, 1e-05
    %v859 = vadd.f32 %v851, 1e-05
    %v860 = vadd.f32 %v852, 1e-05
    %v861 = vadd.f32 %v853, 1e-05
    %v862 = vadd.f32 %v854, 1e-05
    %v863 = vrsqrt.pop %v855
    %v864 = vmul.f32 %v863, %v855
    %v865 = vmul.f32 %v864, %v863
    %v866 = vmul.f32 0.5, %v865
    %v867 = vsub.f32 1.5, %v866
    %v868 = vmul.f32 %v863, %v867
    %vm869 = vweird.f32 %v855
    %vm870 = vweird.f32 %v863
    %vm871 = vmor %vm869, %vm870
    %v872 = vsel %vm871, %v863, %v868
    %v873 = vrsqrt.pop %v856
    %v874 = vmul.f32 %v873, %v856
    %v875 = vmul.f32 %v874, %v873
    %v876 = vmul.f32 0.5, %v875
    %v877 = vsub.f32 1.5, %v876
    %v878 = vmul.f32 %v873, %v877
    %vm879 = vweird.f32 %v856
    %vm880 = vweird.f32 %v873
    %vm881 = vmor %vm879, %vm880
    %v882 = vsel %vm881, %v873, %v878
    %v883 = vrsqrt.pop %v857
    %v884 = vmul.f32 %v883, %v857
    %v885 = vmul.f32 %v884, %v883
    %v886 = vmul.f32 0.5, %v885
    %v887 = vsub.f32 1.5, %v886
    %v888 = vmul.f32 %v883, %v887
    %vm889 = vweird.f32 %v857
    %vm890 = vweird.f32 %v883
    %vm891 = vmor %vm889, %vm890
    %v892 = vsel %vm891, %v883, %v888
    %v893 = vrsqrt.pop %v858
    %v894 = vmul.f32 %v893, %v858
    %v895 = vmul.f32 %v894, %v893
    %v896 = vmul.f32 0.5, %v895
    %v897 = vsub.f32 1.5, %v896
    %v898 = vmul.f32 %v893, %v897
    %vm899 = vweird.f32 %v858
    %vm900 = vweird.f32 %v893
    %vm901 = vmor %vm899, %vm900
    %v902 = vsel %vm901, %v893, %v898
    %v903 = vrsqrt.pop %v859
    %v904 = vmul.f32 %v903, %v859
    %v905 = vmul.f32 %v904, %v903
    %v906 = vmul.f32 0.5, %v905
    %v907 = vsub.f32 1.5, %v906
    %v908 = vmul.f32 %v903, %v907
    %vm909 = vweird.f32 %v859
    %vm910 = vweird.f32 %v903
    %vm911 = vmor %vm909, %vm910
    %v912 = vsel %vm911, %v903, %v908
    %v913 = vrsqrt.pop %v860
    %v914 = vmul.f32 %v913, %v860
    %v915 = vmul.f32 %v914, %v913
    %v916 = vmul.f32 0.5, %v915
    %v917 = vsub.f32 1.5, %v916
    %v918 = vmul.f32 %v913, %v917
    %vm919 = vweird.f32 %v860
    %vm920 = vweird.f32 %v913
    %vm921 = vmor %vm919, %vm920
    %v922 = vsel %vm921, %v913, %v918
    %v923 = vrsqrt.pop %v861
    %v924 = vmul.f32 %v923, %v861
    %v925 = vmul.f32 %v924, %v923
    %v926 = vmul.f32 0.5, %v925
    %v927 = vsub.f32 1.5, %v926
    %v928 = vmul.f32 %v923, %v927
    %vm929 = vweird.f32 %v861
    %vm930 = vweird.f32 %v923
    %vm931 = vmor %vm929, %vm930
    %v932 = vsel %vm931, %v923, %v928
    %v933 = vrsqrt.pop %v862
    %v934 = vmul.f32 %v933, %v862
    %v935 = vmul.f32 %v934, %v933
    %v936 = vmul.f32 0.5, %v935
    %v937 = vsub.f32 1.5, %v936
    %v938 = vmul.f32 %v933, %v937
    %vm939 = vweird.f32 %v862
    %vm940 = vweird.f32 %v933
    %vm941 = vmor %vm939, %vm940
    %v942 = vsel %vm941, %v933, %v938
    %v943 = vmul.f32 %v751, %v872
    %v944 = vmul.f32 %v752, %v882
    %v945 = vmul.f32 %v753, %v892
    %v946 = vmul.f32 %v754, %v902
    %v947 = vmul.f32 %v755, %v912
    %v948 = vmul.f32 %v756, %v922
    %v949 = vmul.f32 %v757, %v932
    %v950 = vmul.f32 %v758, %v942
    %v951 = vmul.f32 %v943, %v396
    %v952 = vmul.f32 %v944, %v400
    %v953 = vmul.f32 %v945, %v404
    %v954 = vmul.f32 %v946, %v408
    %v955 = vmul.f32 %v947, %v412
    %v956 = vmul.f32 %v948, %v416
    %v957 = vmul.f32 %v949, %v420
    %v958 = vmul.f32 %v950, %v424
    %v959 = vadd.f32 %v951, %v452
    %v960 = vadd.f32 %v952, %v456
    %v961 = vadd.f32 %v953, %v460
    %v962 = vadd.f32 %v954, %v464
    %v963 = vadd.f32 %v955, %v468
    %v964 = vadd.f32 %v956, %v472
    %v965 = vadd.f32 %v957, %v476
    %v966 = vadd.f32 %v958, %v480
    %v967 = vmax.f32 %v959, 0.0
    %v968 = vmax.f32 %v960, 0.0
    %v969 = vmax.f32 %v961, 0.0
    %v970 = vmax.f32 %v962, 0.0
    %v971 = vmax.f32 %v963, 0.0
    %v972 = vmax.f32 %v964, 0.0
    %v973 = vmax.f32 %v965, 0.0
    %v974 = vmax.f32 %v966, 0.0
    %v975 = vand.u32 2147483647, %v959
    %v976 = vand.u32 2147483647, %v960
    %v977 = vand.u32 2147483647, %v961
    %v978 = vand.u32 2147483647, %v962
    %v979 = vand.u32 2147483647, %v963
    %v980 = vand.u32 2147483647, %v964
    %v981 = vand.u32 2147483647, %v965
    %v982 = vand.u32 2147483647, %v966
    %v983 = vsub.f32 0.0, %v975
    %v984 = vsub.f32 0.0, %v976
    %v985 = vsub.f32 0.0, %v977
    %v986 = vsub.f32 0.0, %v978
    %v987 = vsub.f32 0.0, %v979
    %v988 = vsub.f32 0.0, %v980
    %v989 = vsub.f32 0.0, %v981
    %v990 = vsub.f32 0.0, %v982
    %v991 = vmul.f32 %v983, 1.442695
    %v992 = vpow.pop %v991
    %v993 = vmul.f32 %v984, 1.442695
    %v994 = vpow.pop %v993
    %v995 = vmul.f32 %v985, 1.442695
    %v996 = vpow.pop %v995
    %v997 = vmul.f32 %v986, 1.442695
    %v998 = vpow.pop %v997
    %v999 = vmul.f32 %v987, 1.442695
    %v1000 = vpow.pop %v999
    %v1001 = vmul.f32 %v988, 1.442695
    %v1002 = vpow.pop %v1001
    %v1003 = vmul.f32 %v989, 1.442695
    %v1004 = vpow.pop %v1003
    %v1005 = vmul.f32 %v990, 1.442695
    %v1006 = vpow.pop %v1005
    %v1007 = vadd.f32 %v992, 1.0
    %v1008 = vadd.f32 %v994, 1.0
    %v1009 = vadd.f32 %v996, 1.0
    %v1010 = vadd.f32 %v998, 1.0
    %v1011 = vadd.f32 %v1000, 1.0
    %v1012 = vadd.f32 %v1002, 1.0
    %v1013 = vadd.f32 %v1004, 1.0
    %v1014 = vadd.f32 %v1006, 1.0
    %v1015 = vlog2.pop %v1007
    %v1016 = vmul.f32 %v1015, 0.6931472
    %v1017 = vlog2.pop %v1008
    %v1018 = vmul.f32 %v1017, 0.6931472
    %v1019 = vlog2.pop %v1009
    %v1020 = vmul.f32 %v1019, 0.6931472
    %v1021 = vlog2.pop %v1010
    %v1022 = vmul.f32 %v1021, 0.6931472
    %v1023 = vlog2.pop %v1011
    %v1024 = vmul.f32 %v1023, 0.6931472
    %v1025 = vlog2.pop %v1012
    %v1026 = vmul.f32 %v1025, 0.6931472
    %v1027 = vlog2.pop %v1013
    %v1028 = vmul.f32 %v1027, 0.6931472
    %v1029 = vlog2.pop %v1014
    %v1030 = vmul.f32 %v1029, 0.6931472
    %v1031 = vadd.f32 %v967, %v1016
    %v1032 = vadd.f32 %v968, %v1018
    %v1033 = vadd.f32 %v969, %v1020
    %v1034 = vadd.f32 %v970, %v1022
    %v1035 = vadd.f32 %v971, %v1024
    %v1036 = vadd.f32 %v972, %v1026
    %v1037 = vadd.f32 %v973, %v1028
    %v1038 = vadd.f32 %v974, %v1030
    %v1039 = vtanh.pop %v1031
    %v1040 = vtanh.pop %v1032
    %v1041 = vtanh.pop %v1033
    %v1042 = vtanh.pop %v1034
    %v1043 = vtanh.pop %v1035
    %v1044 = vtanh.pop %v1036
    %v1045 = vtanh.pop %v1037
    %v1046 = vtanh.pop %v1038
    %v1047 = vmul.f32 %v959, %v1039
    %v1048 = vmul.f32 %v960, %v1040
    %v1049 = vmul.f32 %v961, %v1041
    %v1050 = vmul.f32 %v962, %v1042
    %v1051 = vmul.f32 %v963, %v1043
    %v1052 = vmul.f32 %v964, %v1044
    %v1053 = vmul.f32 %v965, %v1045
    %v1054 = vmul.f32 %v966, %v1046
    %1063 = vst [vmem:[#allocation1] ss:$4 sm:$0xff] %v1047
    %s1064 = scalar_lea.vmem [#allocation1], 1
    %1065 = vst [vmem:[%s1064] ss:$4 sm:$0xff] %v1048
    %s1066 = scalar_lea.vmem [#allocation1], 2
    %1067 = vst [vmem:[%s1066] ss:$4 sm:$0xff] %v1049
    %s1068 = scalar_lea.vmem [#allocation1], 3
    %1069 = vst [vmem:[%s1068] ss:$4 sm:$0xff] %v1050
    %s1070 = scalar_lea.vmem [#allocation1], 32
    %1071 = vst [vmem:[%s1070] ss:$4 sm:$0xff] %v1051
    %s1072 = scalar_lea.vmem [#allocation1], 33
    %1073 = vst [vmem:[%s1072] ss:$4 sm:$0xff] %v1052
    %s1074 = scalar_lea.vmem [#allocation1], 34
    %1075 = vst [vmem:[%s1074] ss:$4 sm:$0xff] %v1053
    %s1076 = scalar_lea.vmem [#allocation1], 35
    %1077 = vst [vmem:[%s1076] ss:$4 sm:$0xff] %v1054
    %v1078 = vld.sshfl [vmem:[#allocation1] sm:$0xff pattern:$0x73625140]
    %v1079 = vld.sshfl [vmem:[#allocation1 + $0x20] sm:$0xff pattern:$0x73625140]
    %s1082 = scalar_lea.vmem [#allocation2], 16
    %1083 = vst.msk [vmem:[%s1082] sm:$0xff] %vm612, %v1078
    %1084 = vst.msk [vmem:[%s1082 + $0x8] sm:$0xff] %vm612, %v1079
    // Predicated region
    $region22: #{tpu_custom_call.1} parent=1 // pred_check
      _
    $region23: #{tpu_custom_call.1} parent=1 // pred_check_branch
      %1086 = sbr.rel (0) target = $region25
    $region24: #{tpu_custom_call.1} parent=1 // pred_region
      %1088 = vsyncadd [#allocation3], 0
      %s1089 = sshll.u32 [#allocation2], 4
      %s1090 = int_to_ptr.vmem [resolvable:$true] %s1089
      %s1091 = sshll.u32 %s5, 4
      %s1092 = int_to_ptr.hbm [resolvable:$true] %s1091
      %1097 = dma.vmem_to_hbm [thread:$0]  %s1090, 512, %s1092, [#allocation3], 128, 128, 8
    $region25: #{tpu_custom_call.1} parent=1 // pred_fallthru
      _
    // Predicated region
    $region26: #{tpu_custom_call.1} parent=1 // pred_check
      _
    $region27: #{tpu_custom_call.1} parent=1 // pred_check_branch
      %1099 = sbr.rel (0) target = $region29
    $region28: #{tpu_custom_call.1} parent=1 // pred_region
      %1101 = dma.done [#allocation3], 512
    $region29: #{tpu_custom_call.1} parent=1 // pred_fallthru
      _
    %1102 = vsyncpa [#allocation3], 1

</llo_original>
